<compile_context>
chip_gen: v7x
topology: tpu7x:2x2x1
jax: 0.10.0
libtpu: 0.0.40
codegen_flags: <defaults>
</compile_context>

<pallas_src>
import functools

import jax
import jax.numpy as jnp
from jax.experimental import pallas as pl
from jax.experimental.pallas import tpu as pltpu


def _round_up(x: int, m: int) -> int:
    return ((x + m - 1) // m) * m


def _round_down(x: int, m: int) -> int:
    return (x // m) * m


def _rmsnorm_kernel(x_ref, scale_ref, o_ref, *, eps, inv_dim):
    # x_ref:     (tile_rows, dim)  input tile
    # scale_ref: (1, dim)          learned scale, already fp32 (broadcast over rows)
    # o_ref:     (tile_rows, dim)  output tile (same dtype as input)
    x = x_ref[...].astype(jnp.float32)
    # mean(x^2) as sum * (1/dim); no lane padding, so this is exact.
    ms = jnp.sum(x * x, axis=-1, keepdims=True) * inv_dim
    inv = jax.lax.rsqrt(ms + eps)
    o_ref[...] = (x * inv * scale_ref[...]).astype(o_ref.dtype)


def _device_kind() -> str:
    try:
        return jax.devices()[0].device_kind.lower()
    except Exception:
        return ""


def _num_tensorcores() -> int:
    """Best-effort TensorCore-per-chip count (v7x has 2, v5e/v6e have 1)."""
    try:
        info = pltpu.get_tpu_info()
        for attr in ("num_cores", "core_count", "tensorcore_count", "num_tensorcores"):
            v = getattr(info, attr, None)
            if isinstance(v, int) and 1 <= v <= 8:
                return v
    except Exception:
        pass
    if "v7" in _device_kind():
        return 2
    return 1


def _pick_vmem_limit_bytes() -> int:
    """Generation-aware scoped-VMEM budget."""
    cap = 0
    try:
        cap = int(getattr(pltpu.get_tpu_info(), "vmem_capacity_bytes", 0) or 0)
    except Exception:
        cap = 0
    if cap <= 0:
        cap = 64 * 1024 * 1024  # conservative default (v7x per-TC VMEM)
    limit = min(cap * 3 // 4, 96 * 1024 * 1024)
    # v7x has only 64 MiB per TensorCore; if the query is chip-level (or we
    # can't tell), clamp so double-buffered tiles stay safely resident.
    if "v7" in _device_kind() or cap <= 64 * 1024 * 1024:
        limit = min(limit, 48 * 1024 * 1024)
    return int(limit)


def rms_norm(x, scale, eps: float = 1e-6, tile_rows: int | None = None):
    """RMSNorm over the last axis of `x`, scaled by `scale` (shape (dim,))."""
    orig_shape = x.shape
    dim = orig_shape[-1]
    assert scale.shape == (dim,)

    rows = 1
    for s in orig_shape[:-1]:
        rows *= s

    in_bytes = jnp.dtype(x.dtype).itemsize
    out_bytes = in_bytes
    vmem_limit = _pick_vmem_limit_bytes()
    num_cores = _num_tensorcores()

    if tile_rows is None:
        # Per-row footprint: double-buffered input + output blocks plus ~3
        # fp32-sized intermediate tiles (upcast, squares, scaled result).
        bytes_per_row = dim * (2 * in_bytes + 2 * out_bytes + 3 * 4)
        budget = vmem_limit * 3 // 4  # single safety factor (headroom for scratch)
        tile_rows = max(16, min(1024, _round_down(budget // bytes_per_row, 16)))
    # Multiple of 16 rows (bf16 sublane packing; also satisfies fp32's 8).
    tile_rows = max(16, _round_up(int(tile_rows), 16))

    if num_cores >= 2:
        # v7x-style megacore: keep >= 2 grid steps per TensorCore so each core
        # still double-buffers, but never shrink below the roofline plateau.
        cap = max(256, _round_up(pl.cdiv(rows, 2 * num_cores), 16))
        tile_rows = min(tile_rows, cap)
    # Single-TC chips (v5e/v6e): keep the full VMEM-derived tile.
    # Never exceed the problem size.
    tile_rows = min(tile_rows, max(16, _round_up(rows, 16)))

    grid_rows = pl.cdiv(rows, tile_rows)

    # Free reshape (collapse leading axes); no padding, no extra HBM passes.
    x2d = x.reshape(rows, dim)
    scale2d = scale.astype(jnp.float32).reshape(1, dim)

    cost = pl.CostEstimate(
        flops=3 * rows * dim,
        transcendentals=rows,
        bytes_accessed=rows * dim * (in_bytes + out_bytes) + dim * 4,
    )

    out2d = pl.pallas_call(
        functools.partial(_rmsnorm_kernel, eps=eps, inv_dim=1.0 / dim),
        out_shape=jax.ShapeDtypeStruct((rows, dim), x.dtype),
        grid_spec=pltpu.PrefetchScalarGridSpec(
            num_scalar_prefetch=0,
            grid=(grid_rows,),
            in_specs=[
                pl.BlockSpec((tile_rows, dim), lambda i: (i, 0)),
                pl.BlockSpec((1, dim), lambda i: (0, 0)),
            ],
            out_specs=pl.BlockSpec((tile_rows, dim), lambda i: (i, 0)),
        ),
        compiler_params=pltpu.CompilerParams(
            dimension_semantics=("parallel",),
            vmem_limit_bytes=vmem_limit,
        ),
        cost_estimate=cost,
    )(x2d, scale2d)

    return out2d.reshape(orig_shape)


def _rms_norm_ref(x, scale, eps=1e-6):
    xf = x.astype(jnp.float32)
    ms = jnp.mean(xf * xf, axis=-1, keepdims=True)
    return (xf * jax.lax.rsqrt(ms + eps) * scale.astype(jnp.float32)).astype(x.dtype)


if __name__ == "__main__":
    # Module params: dim = hidden size; scale initialized to ones (as in __init__).
    batch, seq, dim = 2, 8, 32
    eps = 1e-6

    key = jax.random.PRNGKey(0)
    x = jax.random.normal(key, (batch, seq, dim), dtype=jnp.bfloat16)
    scale = jnp.ones((dim,), dtype=jnp.float32)  # nn.Parameter(torch.ones(dim))

    out = rms_norm(x, scale, eps=eps)
    out = jax.block_until_ready(out)

    ref = _rms_norm_ref(x, scale, eps=eps)
    assert out.shape == x.shape and out.dtype == x.dtype
    assert jnp.allclose(out.astype(jnp.float32), ref.astype(jnp.float32),
                        atol=1e-2, rtol=1e-2)

    # Non-divisible rows and a dim that is not a multiple of 128: exercises the
    # cdiv grid with a partial last row-block and the full-extent lane block.
    x2 = jax.random.normal(jax.random.PRNGKey(1), (3, 37, 160), dtype=jnp.float32)
    s2 = jax.random.normal(jax.random.PRNGKey(2), (160,), dtype=jnp.float32)
    out2 = jax.block_until_ready(rms_norm(x2, s2, eps=eps))
    ref2 = _rms_norm_ref(x2, s2, eps=eps)
    assert out2.shape == x2.shape
    assert jnp.allclose(out2, ref2, atol=1e-5, rtol=1e-5)

    print("KERNEL_OK")
</pallas_src>

<mosaic_0001>
module attributes {stable_mosaic.version = 11 : i64} {
  func.func @_rmsnorm_kernel(%arg0: i32, %arg1: memref<16x32xbf16, #tpu.memory_space<vmem>>, %arg2: memref<1x32xf32, #tpu.memory_space<vmem>>, %arg3: memref<16x32xbf16, #tpu.memory_space<vmem>>) attributes {dimension_semantics = [#tpu.dimension_semantics<parallel>], iteration_bounds = array<i64: 1>, scalar_prefetch = 0 : i64, scratch_operands = 0 : i64, tpu.core_type = #tpu.core_type<tc>, window_params = [{transform_indices = @transform_0, window_bounds = array<i64: 16, 32>}, {pipeline_mode = #tpu.pipeline_mode<synchronous>, transform_indices = @transform_1, window_bounds = array<i64: 1, 32>}, {transform_indices = @transform_2, window_bounds = array<i64: 16, 32>}]} {
    %c0 = arith.constant 0 : index
    %c0_0 = arith.constant 0 : index
    %0 = vector.load %arg1[%c0, %c0_0] : memref<16x32xbf16, #tpu.memory_space<vmem>>, vector<16x32xbf16>
    %1 = arith.extf %0 : vector<16x32xbf16> to vector<16x32xf32>
    %2 = arith.mulf %1, %1 : vector<16x32xf32>
    %cst = arith.constant dense<0.000000e+00> : vector<16xf32>
    %3 = vector.multi_reduction <add>, %2, %cst [1] : vector<16x32xf32> to vector<16xf32>
    %4 = vector.shape_cast %3 : vector<16xf32> to vector<16x1xf32>
    %cst_1 = arith.constant 3.125000e-02 : f32
    %5 = vector.broadcast %cst_1 : f32 to vector<16x1xf32>
    %6 = arith.mulf %4, %5 : vector<16x1xf32>
    %cst_2 = arith.constant 9.99999997E-7 : f32
    %7 = vector.broadcast %cst_2 : f32 to vector<16x1xf32>
    %8 = arith.addf %6, %7 : vector<16x1xf32>
    %9 = math.rsqrt %8 : vector<16x1xf32>
    %10 = vector.broadcast %9 : vector<16x1xf32> to vector<16x32xf32>
    %11 = arith.mulf %1, %10 : vector<16x32xf32>
    %c0_3 = arith.constant 0 : index
    %c0_4 = arith.constant 0 : index
    %12 = vector.load %arg2[%c0_3, %c0_4] : memref<1x32xf32, #tpu.memory_space<vmem>>, vector<1x32xf32>
    %13 = vector.broadcast %12 : vector<1x32xf32> to vector<16x32xf32>
    %14 = arith.mulf %11, %13 : vector<16x32xf32>
    %15 = arith.truncf %14 : vector<16x32xf32> to vector<16x32xbf16>
    %c0_5 = arith.constant 0 : index
    %c0_6 = arith.constant 0 : index
    %16 = vector.load %arg3[%c0_5, %c0_6] : memref<16x32xbf16, #tpu.memory_space<vmem>>, vector<16x32xbf16>
    tpu.vector_store %arg3[%c0_5, %c0_6], %15 {strides = array<i32>} : memref<16x32xbf16, #tpu.memory_space<vmem>>, vector<16x32xbf16>,
    return
  }
  func.func @transform_0(%arg0: i32) -> (i32, i32) {
    %c0_i32 = arith.constant 0 : i32
    %c0_i32_0 = arith.constant 0 : i32
    return %arg0, %c0_i32 : i32, i32
  }
  func.func @transform_1(%arg0: i32) -> (i32, i32) {
    %c0_i32 = arith.constant 0 : i32
    %c0_i32_0 = arith.constant 0 : i32
    %c0_i32_1 = arith.constant 0 : i32
    return %c0_i32, %c0_i32_0 : i32, i32
  }
  func.func @transform_2(%arg0: i32) -> (i32, i32) {
    %c0_i32 = arith.constant 0 : i32
    %c0_i32_0 = arith.constant 0 : i32
    return %arg0, %c0_i32 : i32, i32
  }
}

</mosaic_0001>

<llo_original>
// kernel: tpu_custom_call.1
$region0: #{tpu_custom_call.1}
  #allocation0 [shape = 'u32[]', space=smem, size = 0x4, offset = 0x4, fixed_abs, tag = 'smem constant byte address 0x4 - core index']
  #allocation1 [shape = 'u32[144,128]{1,0:T(1,128)}', space=vmem, size = 0x12000, scoped, tag = 'internal scratch']
  %s0 = inlined_call_operand.hbm [shape: bf16[16,32], index: 0, kind: input, shape index: {}]
  %s1 = inlined_call_operand.vmem [shape: f32[1,32], index: 1, kind: input, shape index: {}]
  %s2 = inlined_call_operand.hbm [shape: bf16[16,32], index: 2, kind: output, shape index: {}]
  %s3 = sld [smem:[#allocation0]]
  $region22: #{tpu_custom_call.1} parent=0
    _
  %s5 = ssub.s32 1, %s3
  %s6 = scalar_select 0, %s5, %s3
  $region1: #{tpu_custom_call.1} parent=0
    #allocation2 [shape = 'u8[4096]{0}', space=vmem, size = 0x1000, scoped, tag = 'input window, operand 0, single buffered']
    #allocation3 [shape = 's32[1]{0}', space=sflag, size = 0x4, scoped, tag = 'scoped memory for tpu_custom_call.1']
    #allocation4 [shape = 's32[1]{0}', space=sflag, size = 0x4, scoped, tag = 'scoped memory for tpu_custom_call.1']
    #allocation5 [shape = 'u8[4096]{0}', space=vmem, size = 0x1000, scoped, tag = 'output window, operand 0, single buffered']
    %7 = vsyncpa [#allocation3], 0
    %8 = vsyncpa [#allocation4], 0
    // Predicated region
    $region2: #{tpu_custom_call.1} parent=1 // pred_check
      _
    $region3: #{tpu_custom_call.1} parent=1 // pred_check_branch
      %10 = sbr.rel (0) target = $region5
    $region4: #{tpu_custom_call.1} parent=1 // pred_region
      %s12 = ssub.s32 128, 128
      %13 = vsyncadd [#allocation3], %s12
      %s14 = sshll.u32 [#allocation2], 4
      %s15 = int_to_ptr.vmem [resolvable:$true] %s14
      %20 = dma.hbm_to_vmem [thread:$0]  %s0, 128, %s15, [#allocation3], 64, 64, 4
    $region5: #{tpu_custom_call.1} parent=1 // pred_fallthru
      _
    // Predicated region
    $region6: #{tpu_custom_call.1} parent=1 // pred_check
      _
    $region7: #{tpu_custom_call.1} parent=1 // pred_check_branch
      %22 = sbr.rel (0) target = $region9
    $region8: #{tpu_custom_call.1} parent=1 // pred_region
      _
    $region9: #{tpu_custom_call.1} parent=1 // pred_fallthru
      _
    // Predicated region
    $region10: #{tpu_custom_call.1} parent=1 // pred_check
      _
    $region11: #{tpu_custom_call.1} parent=1 // pred_check_branch
      %24 = sbr.rel (0) target = $region13
    $region12: #{tpu_custom_call.1} parent=1 // pred_region
      %25 = dma.done [#allocation3], 128
    $region13: #{tpu_custom_call.1} parent=1 // pred_fallthru
      _
    %v26 = vld [vmem:[#allocation2] sm:$0xf]
    %v27 = vld [vmem:[#allocation2 + $0x4] sm:$0xf]
    %v28 = vunpack.c.l.bf16 %v26
    %v29 = vunpack.c.l.bf16 %v27
    %v30 = vmul.f32 %v28, %v28
    %v31 = vmul.f32 %v29, %v29
    %vm32 = vcmask 261120
    %v33 = vsel %vm32, %v30, 0.0
    %34 = vadd.xlane.f32.xlu0 %v33
    %v35 = vpop.xlane.xlu0 %34
    %v36 = vsel %vm32, %v31, 0.0
    %37 = vadd.xlane.f32.xlu0 %v36
    %v38 = vpop.xlane.xlu0 %37
    %v39 = vmul.f32 %v35, 0.03125
    %v40 = vmul.f32 %v38, 0.03125
    %v41 = vadd.f32 %v39, 1e-06
    %v42 = vadd.f32 %v40, 1e-06
    %v43 = vrsqrt.pop %v41
    %v44 = vrsqrt.pop %v42
    %v45 = vmul.f32 %v28, %v43
    %v46 = vmul.f32 %v29, %v44
    %v47 = vld [vmem:[%s1] sm:$0x1]
    %v49 = vlaneseq
    %v50 = vshrl.u32 %v49, 7
    %v51 = vsub.s32 0, %v50
    %v52 = vrot.slane %v47, %v51
    %v54 = vmul.f32 %v45, %v52
    %v55 = vmul.f32 %v46, %v52
    %v56 = vpack.c.bf16 %v55, %v54
    %v58 = vunpack.c.l.b16 %v56
    %v59 = vunpack.c.h.b16 %v56
    %v60 = vpack.c.b16 %v58, %v58
    %v61 = vpack.c.b16 %v59, %v59
    %vm64 = vcmask 257024
    %65 = vst.msk [vmem:[#allocation5] sm:$0xf] %vm64, %v60
    %66 = vst.msk [vmem:[#allocation5 + $0x4] sm:$0xf] %vm64, %v61
    // Predicated region
    $region14: #{tpu_custom_call.1} parent=1 // pred_check
      _
    $region15: #{tpu_custom_call.1} parent=1 // pred_check_branch
      %68 = sbr.rel (0) target = $region17
    $region16: #{tpu_custom_call.1} parent=1 // pred_region
      %s70 = ssub.s32 128, 128
      %71 = vsyncadd [#allocation4], %s70
      %s72 = sshll.u32 [#allocation5], 4
      %s73 = int_to_ptr.vmem [resolvable:$true] %s72
      %78 = dma.vmem_to_hbm [thread:$0]  %s73, 128, %s2, [#allocation4], 64, 64, 4
    $region17: #{tpu_custom_call.1} parent=1 // pred_fallthru
      _
    // Predicated region
    $region18: #{tpu_custom_call.1} parent=1 // pred_check
      _
    $region19: #{tpu_custom_call.1} parent=1 // pred_check_branch
      %80 = sbr.rel (0) target = $region21
    $region20: #{tpu_custom_call.1} parent=1 // pred_region
      %81 = dma.done [#allocation4], 128
    $region21: #{tpu_custom_call.1} parent=1 // pred_fallthru
      _
    %82 = vsyncpa [#allocation3], 1
    %83 = vsyncpa [#allocation4], 1

</llo_original>
